<compile_context>
chip_gen: v6e
topology: v6e:2x2x1
jax: 0.10.0
libtpu: 0.0.40
codegen_flags: <defaults>
</compile_context>

<pallas_src>
import functools

import jax
import jax.numpy as jnp
from jax.experimental import pallas as pl
from jax.experimental.pallas import tpu as pltpu


def _round_up(n, m):
    return ((n + m - 1) // m) * m


def _pad_to(a, shape):
    pads = [(0, t - s) for s, t in zip(a.shape, shape)]
    return jnp.pad(a, pads)


def _stats_block(h):
    """Pack per-tile sum (row 0) and sum-of-squares (row 1) into an (1, 8, F) block."""
    s = jnp.sum(h, axis=0, keepdims=True)        # (1, F)
    sq = jnp.sum(h * h, axis=0, keepdims=True)   # (1, F)
    row = jax.lax.broadcasted_iota(jnp.int32, (8, h.shape[1]), 0)
    stats = jnp.where(row == 0, s, 0.0) + jnp.where(row == 1, sq, 0.0)
    return stats[None]                           # (1, 8, F)


def _row_mask(tile_batch, true_batch):
    rows = pl.program_id(0) * tile_batch + jax.lax.broadcasted_iota(
        jnp.int32, (tile_batch, 1), 0)
    return rows < true_batch                     # (tile_batch, 1) bool


# ---------- Pass A: h1 = x @ w1 + b1, accumulate per-tile BN1 partial stats ----------
def _linear_stats_kernel(x_ref, w_ref, b_ref, h_ref, stats_ref, *, true_batch, tile_batch):
    h = jnp.dot(x_ref[...], w_ref[...], preferred_element_type=jnp.float32) + b_ref[...]
    h = jnp.where(_row_mask(tile_batch, true_batch), h, 0.0)  # zero padded rows (exact stats)
    h_ref[...] = h
    stats_ref[...] = _stats_block(h)


# ---------- Pass B: sigmoid(BN1(h1)) @ w2 + b2, accumulate per-tile BN2 partial stats ----------
def _bn_act_linear_stats_kernel(h_ref, scale_ref, shift_ref, w_ref, b_ref,
                                o_ref, stats_ref, *, true_batch, tile_batch):
    a = jax.nn.sigmoid(h_ref[...] * scale_ref[...] + shift_ref[...])
    h2 = jnp.dot(a.astype(w_ref.dtype), w_ref[...],
                 preferred_element_type=jnp.float32) + b_ref[...]
    h2 = jnp.where(_row_mask(tile_batch, true_batch), h2, 0.0)
    o_ref[...] = h2
    stats_ref[...] = _stats_block(h2)


# ---------- Pass C: sigmoid( sigmoid(BN2(h2)) @ w3 + b3 ) ----------
def _bn_act_linear_sig_kernel(h_ref, scale_ref, shift_ref, w_ref, b_ref, o_ref):
    a = jax.nn.sigmoid(h_ref[...] * scale_ref[...] + shift_ref[...])
    y = jnp.dot(a.astype(w_ref.dtype), w_ref[...],
                preferred_element_type=jnp.float32) + b_ref[...]
    o_ref[...] = jax.nn.sigmoid(y).astype(o_ref.dtype)


def _bn_scale_shift(stats, gamma, beta, n, eps):
    """Fold exact full-batch BN (training mode, biased var) into per-feature scale/shift."""
    total = jnp.sum(stats, axis=0)                      # (8, F): row0 = sum, row1 = sumsq
    mean = total[0] / n
    var = jnp.maximum(total[1] / n - mean * mean, 0.0)  # biased variance
    inv = jax.lax.rsqrt(var + eps)
    scale = gamma * inv                                 # (1, F)
    shift = beta - mean * scale                         # (1, F)
    return scale.astype(jnp.float32), shift.astype(jnp.float32)


def ann_forward(x, params, DATASOURCE=None, test_station=None, *,
                tile_batch=512, compute_dtype=jnp.float32):
    """Pallas implementation of ANN.forward. DATASOURCE/test_station are unused
    (they are unused in the PyTorch forward as well)."""
    del DATASOURCE, test_station
    (w1, b1, g1, be1, w2, b2, g2, be2, w3, b3) = params
    batch, in_features = x.shape
    hid = w1.shape[1]
    out_size = w3.shape[1]
    eps = jnp.float32(1e-5)

    # ---- lane-dense zero padding of parameters (exact on the real columns) ----
    HID = _round_up(hid, 128)
    OUTP = _round_up(out_size, 128)
    w1p = _pad_to(w1, (in_features, HID)).astype(compute_dtype)
    b1p = _pad_to(b1, (1, HID))
    g1p = _pad_to(g1, (1, HID))
    be1p = _pad_to(be1, (1, HID))
    # zeroed padded *rows* of w2/w3 keep the sigmoid(0)=0.5 padded lanes from leaking
    w2p = _pad_to(w2, (HID, HID)).astype(compute_dtype)
    b2p = _pad_to(b2, (1, HID))
    g2p = _pad_to(g2, (1, HID))
    be2p = _pad_to(be2, (1, HID))
    w3p = _pad_to(w3, (HID, OUTP)).astype(compute_dtype)
    b3p = _pad_to(b3, (1, OUTP))

    # ---- batch tiling ----
    TB = _round_up(min(tile_batch, _round_up(batch, 8)), 8)
    batch_pad = _round_up(batch, TB)
    num_tiles = batch_pad // TB
    xp = _pad_to(x, (batch_pad, in_features)).astype(compute_dtype)

    cparams = pltpu.CompilerParams(dimension_semantics=("parallel",))

    # ---- Pass A ----
    h1, st1 = pl.pallas_call(
        functools.partial(_linear_stats_kernel, true_batch=batch, tile_batch=TB),
        out_shape=(jax.ShapeDtypeStruct((batch_pad, HID), jnp.float32),
                   jax.ShapeDtypeStruct((num_tiles, 8, HID), jnp.float32)),
        grid=(num_tiles,),
        in_specs=[
            pl.BlockSpec((TB, in_features), lambda i: (i, 0)),
            pl.BlockSpec((in_features, HID), lambda i: (0, 0)),
            pl.BlockSpec((1, HID), lambda i: (0, 0)),
        ],
        out_specs=(
            pl.BlockSpec((TB, HID), lambda i: (i, 0)),
            pl.BlockSpec((1, 8, HID), lambda i: (i, 0, 0)),
        ),
        compiler_params=cparams,
    )(xp, w1p, b1p)

    scale1, shift1 = _bn_scale_shift(st1, g1p, be1p, batch, eps)

    # ---- Pass B ----
    h2, st2 = pl.pallas_call(
        functools.partial(_bn_act_linear_stats_kernel, true_batch=batch, tile_batch=TB),
        out_shape=(jax.ShapeDtypeStruct((batch_pad, HID), jnp.float32),
                   jax.ShapeDtypeStruct((num_tiles, 8, HID), jnp.float32)),
        grid=(num_tiles,),
        in_specs=[
            pl.BlockSpec((TB, HID), lambda i: (i, 0)),
            pl.BlockSpec((1, HID), lambda i: (0, 0)),
            pl.BlockSpec((1, HID), lambda i: (0, 0)),
            pl.BlockSpec((HID, HID), lambda i: (0, 0)),
            pl.BlockSpec((1, HID), lambda i: (0, 0)),
        ],
        out_specs=(
            pl.BlockSpec((TB, HID), lambda i: (i, 0)),
            pl.BlockSpec((1, 8, HID), lambda i: (i, 0, 0)),
        ),
        compiler_params=cparams,
    )(h1, scale1, shift1, w2p, b2p)

    scale2, shift2 = _bn_scale_shift(st2, g2p, be2p, batch, eps)

    # ---- Pass C ----
    y = pl.pallas_call(
        _bn_act_linear_sig_kernel,
        out_shape=jax.ShapeDtypeStruct((batch_pad, OUTP), jnp.float32),
        grid=(num_tiles,),
        in_specs=[
            pl.BlockSpec((TB, HID), lambda i: (i, 0)),
            pl.BlockSpec((1, HID), lambda i: (0, 0)),
            pl.BlockSpec((1, HID), lambda i: (0, 0)),
            pl.BlockSpec((HID, OUTP), lambda i: (0, 0)),
            pl.BlockSpec((1, OUTP), lambda i: (0, 0)),
        ],
        out_specs=pl.BlockSpec((TB, OUTP), lambda i: (i, 0)),
        compiler_params=cparams,
    )(h2, scale2, shift2, w3p, b3p)

    return y[:batch, :out_size]


def init_ann_params(key, input_size, output_size, hidden=32):
    """Deterministic init mimicking PyTorch nn.Linear defaults
    (uniform(-1/sqrt(fan_in), 1/sqrt(fan_in))) and BatchNorm1d (gamma=1, beta=0).
    Linear weights are returned as (in, out)."""
    ks = jax.random.split(key, 6)

    def linear(kw, kb, fan_in, fan_out):
        bound = 1.0 / jnp.sqrt(jnp.float32(fan_in))
        w = jax.random.uniform(kw, (fan_in, fan_out), jnp.float32, -bound, bound)
        b = jax.random.uniform(kb, (1, fan_out), jnp.float32, -bound, bound)
        return w, b

    w1, b1 = linear(ks[0], ks[1], input_size, hidden)
    w2, b2 = linear(ks[2], ks[3], hidden, hidden)
    w3, b3 = linear(ks[4], ks[5], hidden, output_size)
    g1 = jnp.ones((1, hidden), jnp.float32)
    be1 = jnp.zeros((1, hidden), jnp.float32)
    g2 = jnp.ones((1, hidden), jnp.float32)
    be2 = jnp.zeros((1, hidden), jnp.float32)
    return (w1, b1, g1, be1, w2, b2, g2, be2, w3, b3)


def _reference_forward(x, params):
    """Pure-JAX reference for correctness checking."""
    (w1, b1, g1, be1, w2, b2, g2, be2, w3, b3) = params
    eps = 1e-5

    def bn(h, g, be):
        m = jnp.mean(h, axis=0, keepdims=True)
        v = jnp.mean((h - m) ** 2, axis=0, keepdims=True)
        return (h - m) / jnp.sqrt(v + eps) * g + be

    h = x @ w1 + b1
    h = jax.nn.sigmoid(bn(h, g1, be1))
    h = h @ w2 + b2
    h = jax.nn.sigmoid(bn(h, g2, be2))
    h = h @ w3 + b3
    return jax.nn.sigmoid(h)


if __name__ == "__main__":
    key = jax.random.PRNGKey(0)
    k_x, k_p, k_x2 = jax.random.split(key, 3)

    input_size = 16
    output_size = 4
    params = init_ann_params(k_p, input_size, output_size)

    # Small batch: single tile, single grid step per pass.
    batch = 8
    x = jax.random.normal(k_x, (batch, input_size), jnp.float32)
    out = jax.block_until_ready(ann_forward(x, params, DATASOURCE="synthetic", test_station=0))
    ref = _reference_forward(x, params)
    assert out.shape == (batch, output_size)
    assert jnp.allclose(out, ref, atol=1e-4, rtol=1e-4), float(jnp.max(jnp.abs(out - ref)))

    # Larger batch, not a multiple of the tile: exercises multi-tile grid + row masking,
    # with exact full-batch BN statistics.
    batch2 = 72
    x2 = jax.random.normal(k_x2, (batch2, input_size), jnp.float32)
    out2 = jax.block_until_ready(ann_forward(x2, params, tile_batch=32))
    ref2 = _reference_forward(x2, params)
    assert out2.shape == (batch2, output_size)
    assert jnp.allclose(out2, ref2, atol=1e-4, rtol=1e-4), float(jnp.max(jnp.abs(out2 - ref2)))

    # bf16 inputs/weights (v6e/v7x MXU path); accumulation and BN statistics remain f32.
    out_bf16 = jax.block_until_ready(
        ann_forward(x2, params, tile_batch=32, compute_dtype=jnp.bfloat16))
    assert out_bf16.shape == (batch2, output_size)
    assert jnp.allclose(out_bf16, ref2, atol=5e-2, rtol=5e-2)

    print("KERNEL_OK")
</pallas_src>

<mosaic_0001>
module attributes {stable_mosaic.version = 11 : i64} {
  func.func @_linear_stats_kernel(%arg0: i32, %arg1: memref<8x16xf32, #tpu.memory_space<vmem>>, %arg2: memref<16x128xf32, #tpu.memory_space<vmem>>, %arg3: memref<1x128xf32, #tpu.memory_space<vmem>>, %arg4: memref<8x128xf32, #tpu.memory_space<vmem>>, %arg5: memref<1x8x128xf32, #tpu.memory_space<vmem>>) attributes {dimension_semantics = [#tpu.dimension_semantics<parallel>], iteration_bounds = array<i64: 1>, scalar_prefetch = 0 : i64, scratch_operands = 0 : i64, tpu.core_type = #tpu.core_type<tc>, window_params = [{transform_indices = @transform_0, window_bounds = array<i64: 8, 16>}, {pipeline_mode = #tpu.pipeline_mode<synchronous>, transform_indices = @transform_1, window_bounds = array<i64: 16, 128>}, {pipeline_mode = #tpu.pipeline_mode<synchronous>, transform_indices = @transform_2, window_bounds = array<i64: 1, 128>}, {transform_indices = @transform_3, window_bounds = array<i64: 8, 128>}, {transform_indices = @transform_4, window_bounds = array<i64: 1, 8, 128>}]} {
    %c0 = arith.constant 0 : index
    %c0_0 = arith.constant 0 : index
    %0 = vector.load %arg1[%c0, %c0_0] : memref<8x16xf32, #tpu.memory_space<vmem>>, vector<8x16xf32>
    %c0_1 = arith.constant 0 : index
    %c0_2 = arith.constant 0 : index
    %1 = vector.load %arg2[%c0_1, %c0_2] : memref<16x128xf32, #tpu.memory_space<vmem>>, vector<16x128xf32>
    %cst = arith.constant dense<0.000000e+00> : vector<8x128xf32>
    %2 = tpu.matmul %0, %1, %cst {dimension_numbers = #tpu.dot_dimension_numbers<[1], [0], [0], [1], [0, 0, 1, 1], [], []>} : vector<8x16xf32>, vector<16x128xf32>, vector<8x128xf32> -> vector<8x128xf32>
    %c0_3 = arith.constant 0 : index
    %c0_4 = arith.constant 0 : index
    %3 = vector.load %arg3[%c0_3, %c0_4] : memref<1x128xf32, #tpu.memory_space<vmem>>, vector<1x128xf32>
    %4 = vector.broadcast %3 : vector<1x128xf32> to vector<8x128xf32>
    %5 = arith.addf %2, %4 : vector<8x128xf32>
    %c8_i32 = arith.constant 8 : i32
    %6 = arith.muli %arg0, %c8_i32 : i32
    %7 = tpu.iota {dimensions = array<i32: 0>} : vector<8x1xi32>
    %8 = vector.broadcast %6 : i32 to vector<8x1xi32>
    %9 = arith.addi %8, %7 : vector<8x1xi32>
    %c8_i32_5 = arith.constant 8 : i32
    %10 = vector.broadcast %c8_i32_5 : i32 to vector<8x1xi32>
    %11 = arith.cmpi slt, %9, %10 : vector<8x1xi32>
    %cst_6 = arith.constant 0.000000e+00 : f32
    %12 = vector.shape_cast %11 : vector<8x1xi1> to vector<8x1xi1>
    %13 = vector.broadcast %12 : vector<8x1xi1> to vector<8x128xi1>
    %14 = vector.broadcast %cst_6 : f32 to vector<8x128xf32>
    %15 = arith.select %13, %5, %14 : vector<8x128xi1>, vector<8x128xf32>
    %c0_7 = arith.constant 0 : index
    %c0_8 = arith.constant 0 : index
    %16 = vector.load %arg4[%c0_7, %c0_8] : memref<8x128xf32, #tpu.memory_space<vmem>>, vector<8x128xf32>
    tpu.vector_store %arg4[%c0_7, %c0_8], %15 {strides = array<i32>} : memref<8x128xf32, #tpu.memory_space<vmem>>, vector<8x128xf32>,
    %cst_9 = arith.constant dense<0.000000e+00> : vector<128xf32>
    %17 = vector.multi_reduction <add>, %15, %cst_9 [0] : vector<8x128xf32> to vector<128xf32>
    %18 = vector.shape_cast %17 : vector<128xf32> to vector<1x128xf32>
    %19 = arith.mulf %15, %15 : vector<8x128xf32>
    %cst_10 = arith.constant dense<0.000000e+00> : vector<128xf32>
    %20 = vector.multi_reduction <add>, %19, %cst_10 [0] : vector<8x128xf32> to vector<128xf32>
    %21 = vector.shape_cast %20 : vector<128xf32> to vector<1x128xf32>
    %22 = tpu.iota {dimensions = array<i32: 0>} : vector<8x128xi32>
    %c0_i32 = arith.constant 0 : i32
    %23 = vector.broadcast %c0_i32 : i32 to vector<8x128xi32>
    %24 = arith.cmpi eq, %22, %23 : vector<8x128xi32>
    %cst_11 = arith.constant 0.000000e+00 : f32
    %25 = vector.shape_cast %18 : vector<1x128xf32> to vector<1x128xf32>
    %26 = vector.broadcast %25 : vector<1x128xf32> to vector<8x128xf32>
    %27 = vector.broadcast %cst_11 : f32 to vector<8x128xf32>
    %28 = arith.select %24, %26, %27 : vector<8x128xi1>, vector<8x128xf32>
    %c1_i32 = arith.constant 1 : i32
    %29 = vector.broadcast %c1_i32 : i32 to vector<8x128xi32>
    %30 = arith.cmpi eq, %22, %29 : vector<8x128xi32>
    %cst_12 = arith.constant 0.000000e+00 : f32
    %31 = vector.shape_cast %21 : vector<1x128xf32> to vector<1x128xf32>
    %32 = vector.broadcast %31 : vector<1x128xf32> to vector<8x128xf32>
    %33 = vector.broadcast %cst_12 : f32 to vector<8x128xf32>
    %34 = arith.select %30, %32, %33 : vector<8x128xi1>, vector<8x128xf32>
    %35 = arith.addf %28, %34 : vector<8x128xf32>
    %36 = vector.shape_cast %35 : vector<8x128xf32> to vector<1x8x128xf32>
    %c0_13 = arith.constant 0 : index
    %c0_14 = arith.constant 0 : index
    %c0_15 = arith.constant 0 : index
    %37 = vector.load %arg5[%c0_13, %c0_14, %c0_15] : memref<1x8x128xf32, #tpu.memory_space<vmem>>, vector<1x8x128xf32>
    tpu.vector_store %arg5[%c0_13, %c0_14, %c0_15], %36 {strides = array<i32>} : memref<1x8x128xf32, #tpu.memory_space<vmem>>, vector<1x8x128xf32>,
    return
  }
  func.func @transform_0(%arg0: i32) -> (i32, i32) {
    %c0_i32 = arith.constant 0 : i32
    %c0_i32_0 = arith.constant 0 : i32
    return %arg0, %c0_i32 : i32, i32
  }
  func.func @transform_1(%arg0: i32) -> (i32, i32) {
    %c0_i32 = arith.constant 0 : i32
    %c0_i32_0 = arith.constant 0 : i32
    %c0_i32_1 = arith.constant 0 : i32
    return %c0_i32, %c0_i32_0 : i32, i32
  }
  func.func @transform_2(%arg0: i32) -> (i32, i32) {
    %c0_i32 = arith.constant 0 : i32
    %c0_i32_0 = arith.constant 0 : i32
    %c0_i32_1 = arith.constant 0 : i32
    return %c0_i32, %c0_i32_0 : i32, i32
  }
  func.func @transform_3(%arg0: i32) -> (i32, i32) {
    %c0_i32 = arith.constant 0 : i32
    %c0_i32_0 = arith.constant 0 : i32
    return %arg0, %c0_i32 : i32, i32
  }
  func.func @transform_4(%arg0: i32) -> (i32, i32, i32) {
    %c0_i32 = arith.constant 0 : i32
    %c0_i32_0 = arith.constant 0 : i32
    %c0_i32_1 = arith.constant 0 : i32
    return %arg0, %c0_i32, %c0_i32_0 : i32, i32, i32
  }
}

</mosaic_0001>

<llo_original>
// kernel: tpu_custom_call.1
$region0: #{tpu_custom_call.1}
  #allocation0 [shape = 'u32[]', space=smem, size = 0x4, offset = 0x4, fixed_abs, tag = 'smem constant byte address 0x4 - core index']
  #allocation1 [shape = 'u32[144,128]{1,0:T(1,128)}', space=vmem, size = 0x12000, scoped, tag = 'internal scratch']
  %s0 = inlined_call_operand.hbm [shape: f32[8,16], index: 0, kind: input, shape index: {}]
  %s1 = inlined_call_operand.hbm [shape: f32[16,128], index: 1, kind: input, shape index: {}]
  %s2 = inlined_call_operand.vmem [shape: f32[1,128], index: 2, kind: input, shape index: {}]
  %s3 = inlined_call_operand.hbm [shape: f32[8,128], index: 3, kind: output, shape index: {0}]
  %s4 = inlined_call_operand.hbm [shape: f32[1,8,128], index: 4, kind: output, shape index: {1}]
  %5 = xla_tuple %s3, %s4
  %s6 = sld [smem:[#allocation0]]
  $region38: #{tpu_custom_call.1} parent=0
    _
  %s8 = ssub.s32 1, %s6
  %s9 = scalar_select 0, %s8, %s6
  $region1: #{tpu_custom_call.1} parent=0
    #allocation2 [shape = 'u8[4096]{0}', space=vmem, size = 0x1000, scoped, tag = 'input window, operand 0, single buffered']
    #allocation3 [shape = 's32[1]{0}', space=sflag, size = 0x4, scoped, tag = 'scoped memory for tpu_custom_call.1']
    #allocation4 [shape = 's32[1]{0}', space=sflag, size = 0x4, scoped, tag = 'scoped memory for tpu_custom_call.1']
    #allocation5 [shape = 'u8[8192]{0}', space=vmem, size = 0x2000, scoped, tag = 'input window, operand 1, single buffered']
    #allocation6 [shape = 's32[1]{0}', space=sflag, size = 0x4, scoped, tag = 'scoped memory for tpu_custom_call.1']
    #allocation7 [shape = 'u8[4096]{0}', space=vmem, size = 0x1000, scoped, tag = 'output window, operand 0, single buffered']
    #allocation8 [shape = 'u8[4096]{0}', space=vmem, size = 0x1000, scoped, tag = 'output window, operand 1, single buffered']
    #allocation9 [shape = 's32[1]{0}', space=sflag, size = 0x4, scoped, tag = 'scoped memory for tpu_custom_call.1']
    %10 = vsyncpa [#allocation3], 0
    %11 = vsyncpa [#allocation6], 0
    %12 = vsyncpa [#allocation4], 0
    %13 = vsyncpa [#allocation9], 0
    // Predicated region
    $region2: #{tpu_custom_call.1} parent=1 // pred_check
      _
    $region3: #{tpu_custom_call.1} parent=1 // pred_check_branch
      %15 = sbr.rel (0) target = $region5
    $region4: #{tpu_custom_call.1} parent=1 // pred_region
      %s17 = ssub.s32 128, 128
      %18 = vsyncadd [#allocation3], %s17
      %s20 = sshll.u32 [#allocation2], 4
      %s21 = int_to_ptr.vmem [resolvable:$true] %s20
      %23 = dma.hbm_to_vmem [thread:$0]  %s0, 128, %s21, [#allocation3]
    $region5: #{tpu_custom_call.1} parent=1 // pred_fallthru
      _
    // Predicated region
    $region6: #{tpu_custom_call.1} parent=1 // pred_check
      _
    $region7: #{tpu_custom_call.1} parent=1 // pred_check_branch
      %25 = sbr.rel (0) target = $region9
    $region8: #{tpu_custom_call.1} parent=1 // pred_region
      %s27 = ssub.s32 256, 256
      %28 = vsyncadd [#allocation6], %s27
      %s29 = sshll.u32 [#allocation5], 4
      %s30 = int_to_ptr.vmem [resolvable:$true] %s29
      %35 = dma.hbm_to_vmem [thread:$0]  %s1, 256, %s30, [#allocation6], 128, 128, 8
    $region9: #{tpu_custom_call.1} parent=1 // pred_fallthru
      _
    // Predicated region
    $region10: #{tpu_custom_call.1} parent=1 // pred_check
      _
    $region11: #{tpu_custom_call.1} parent=1 // pred_check_branch
      %37 = sbr.rel (0) target = $region13
    $region12: #{tpu_custom_call.1} parent=1 // pred_region
      _
    $region13: #{tpu_custom_call.1} parent=1 // pred_fallthru
      _
    // Predicated region
    $region14: #{tpu_custom_call.1} parent=1 // pred_check
      _
    $region15: #{tpu_custom_call.1} parent=1 // pred_check_branch
      %39 = sbr.rel (0) target = $region17
    $region16: #{tpu_custom_call.1} parent=1 // pred_region
      %40 = dma.done [#allocation3], 128
    $region17: #{tpu_custom_call.1} parent=1 // pred_fallthru
      _
    // Predicated region
    $region18: #{tpu_custom_call.1} parent=1 // pred_check
      _
    $region19: #{tpu_custom_call.1} parent=1 // pred_check_branch
      %42 = sbr.rel (0) target = $region21
    $region20: #{tpu_custom_call.1} parent=1 // pred_region
      %43 = dma.done [#allocation6], 256
    $region21: #{tpu_custom_call.1} parent=1 // pred_fallthru
      _
    %v44 = vld [vmem:[#allocation2] sm:$0xff]
    %v45 = vld [vmem:[#allocation5] sm:$0xff]
    %v46 = vld [vmem:[#allocation5 + $0x8] sm:$0xff]
    %v47 = vld [vmem:[%s2] sm:$0x1]
    %v49 = vlaneseq
    %v50 = vshrl.u32 %v49, 7
    %v51 = vsub.s32 0, %v50
    %v52 = vrot.slane %v47, %v51
    %vm54 = vcmask 130048
    %v56 = vsel %vm54, %v44, 0
    %58 = vmatprep.subr.mxu0 0.0
    %59 = vmatpush1.msra.mxu0 0.0
    %60 = vmatprep.subr.mxu0 0.0
    %61 = vmatpush1.msra.mxu0 0.0
    %62 = vmatprep.subr.mxu0 0.0
    %63 = vmatpush1.msra.mxu0 0.0
    %64 = vmatprep.subr.mxu0 0.0
    %65 = vmatpush1.msra.mxu0 0.0
    %66 = vmatprep.subr.mxu0 0.0
    %67 = vmatpush1.msra.mxu0 0.0
    %68 = vmatprep.subr.mxu0 0.0
    %69 = vmatpush1.msra.mxu0 0.0
    %70 = vmatprep.subr.mxu0 0.0
    %71 = vmatpush1.msra.mxu0 0.0
    %72 = vmatprep.subr.mxu0 0.0
    %73 = vmatpush1.msra.mxu0 0.0
    %74 = vmatprep.subr.mxu0 0.0
    %75 = vmatpush1.msra.mxu0 0.0
    %76 = vmatprep.subr.mxu0 0.0
    %77 = vmatpush1.msra.mxu0 0.0
    %78 = vmatprep.subr.mxu0 0.0
    %79 = vmatpush1.msra.mxu0 0.0
    %80 = vmatprep.subr.mxu0 0.0
    %81 = vmatpush1.msra.mxu0 0.0
    %82 = vmatprep.subr.mxu0 0.0
    %83 = vmatpush1.msra.mxu0 0.0
    %84 = vmatprep.subr.mxu0 0.0
    %85 = vmatpush1.msra.mxu0 0.0
    %86 = vmatprep.subr.mxu0 0.0
    %87 = vmatpush1.msra.mxu0 %v46
    %88 = vmatprep.subr.mxu0 0.0
    %89 = vmatpush1.msra.mxu0 %v45
    %90 = vmatprep.subr.mxu0 0.0
    %91 = vmatpush2.msra.mxu0 0.0
    %92 = vmatprep.subr.mxu0 0.0
    %93 = vmatpush2.msra.mxu0 0.0
    %94 = vmatprep.subr.mxu0 0.0
    %95 = vmatpush2.msra.mxu0 0.0
    %96 = vmatprep.subr.mxu0 0.0
    %97 = vmatpush2.msra.mxu0 0.0
    %98 = vmatprep.subr.mxu0 0.0
    %99 = vmatpush2.msra.mxu0 0.0
    %100 = vmatprep.subr.mxu0 0.0
    %101 = vmatpush2.msra.mxu0 0.0
    %102 = vmatprep.subr.mxu0 0.0
    %103 = vmatpush2.msra.mxu0 0.0
    %104 = vmatprep.subr.mxu0 0.0
    %105 = vmatpush2.msra.mxu0 0.0
    %106 = vmatprep.subr.mxu0 0.0
    %107 = vmatpush2.msra.mxu0 0.0
    %108 = vmatprep.subr.mxu0 0.0
    %109 = vmatpush2.msra.mxu0 0.0
    %110 = vmatprep.subr.mxu0 0.0
    %111 = vmatpush2.msra.mxu0 0.0
    %112 = vmatprep.subr.mxu0 0.0
    %113 = vmatpush2.msra.mxu0 0.0
    %114 = vmatprep.subr.mxu0 0.0
    %115 = vmatpush2.msra.mxu0 0.0
    %116 = vmatprep.subr.mxu0 0.0
    %117 = vmatpush2.msra.mxu0 0.0
    %118 = vmatprep.subr.mxu0 0.0
    %119 = vmatpush2.msra.mxu0 0.0
    %120 = vmatprep.subr.mxu0 0.0
    %121 = vmatpush2.msra.mxu0 0.0
    %122 = vmatprep.mubr.f32.mxu0 0.0
    %123 = vmatmul.mubr.f32.gmra.mxu0 %v56
    %v124 = vpop.f32.mrf.mxu0
    %v125 = vadd.f32 %v52, %v124
    %v126 = vpop.f32.mrf.mxu0
    %127 = vdwg.mxu0
    %s128 = smul.u32 0, 8
    %v129 = vlaneseq
    %v130 = vshrl.u32 %v129, 7
    %v131 = vstv %s128
    %v132 = vadd.s32 %v131, %v130
    %vm133 = vcmp.lt.s32.totalorder %v132, 8
    %v134 = vsel %vm133, 1, 0
    %vm135 = vcmp.eq.s32.totalorder %v134, 1
    %v136 = vsel %vm135, %v125, 0.0
    %137 = vst [vmem:[#allocation7] sm:$0xff] %v136
    %v138 = vrot.slane %v136, 4
    %v139 = vadd.f32 %v136, %v138
    %v140 = vrot.slane %v139, 2
    %v141 = vadd.f32 %v139, %v140
    %v142 = vrot.slane %v141, 1
    %v143 = vadd.f32 %v141, %v142
    %v144 = vmul.f32 %v136, %v136
    %v145 = vrot.slane %v144, 4
    %v146 = vadd.f32 %v144, %v145
    %v147 = vrot.slane %v146, 2
    %v148 = vadd.f32 %v146, %v147
    %v149 = vrot.slane %v148, 1
    %v150 = vadd.f32 %v148, %v149
    %vm151 = vcmp.eq.s32.totalorder %v130, 0
    %v152 = vsel %vm151, %v143, 0.0
    %vm153 = vcmp.eq.s32.totalorder %v130, 1
    %v154 = vsel %vm153, %v150, 0.0
    %v155 = vadd.f32 %v152, %v154
    %156 = vst [vmem:[#allocation8] sm:$0xff] %v155
    // Predicated region
    $region22: #{tpu_custom_call.1} parent=1 // pred_check
      _
    $region23: #{tpu_custom_call.1} parent=1 // pred_check_branch
      %158 = sbr.rel (0) target = $region25
    $region24: #{tpu_custom_call.1} parent=1 // pred_region
      %s160 = ssub.s32 128, 128
      %161 = vsyncadd [#allocation4], %s160
      %s163 = sshll.u32 [#allocation7], 4
      %s164 = int_to_ptr.vmem [resolvable:$true] %s163
      %166 = dma.vmem_to_hbm [thread:$0]  %s164, 128, %s3, [#allocation4]
    $region25: #{tpu_custom_call.1} parent=1 // pred_fallthru
      _
    // Predicated region
    $region26: #{tpu_custom_call.1} parent=1 // pred_check
      _
    $region27: #{tpu_custom_call.1} parent=1 // pred_check_branch
      %168 = sbr.rel (0) target = $region29
    $region28: #{tpu_custom_call.1} parent=1 // pred_region
      %s170 = ssub.s32 128, 128
      %171 = vsyncadd [#allocation9], %s170
      %s173 = sshll.u32 [#allocation8], 4
      %s174 = int_to_ptr.vmem [resolvable:$true] %s173
      %176 = dma.vmem_to_hbm [thread:$0]  %s174, 128, %s4, [#allocation9]
    $region29: #{tpu_custom_call.1} parent=1 // pred_fallthru
      _
    // Predicated region
    $region30: #{tpu_custom_call.1} parent=1 // pred_check
      _
    $region31: #{tpu_custom_call.1} parent=1 // pred_check_branch
      %178 = sbr.rel (0) target = $region33
    $region32: #{tpu_custom_call.1} parent=1 // pred_region
      %179 = dma.done [#allocation4], 128
    $region33: #{tpu_custom_call.1} parent=1 // pred_fallthru
      _
    // Predicated region
    $region34: #{tpu_custom_call.1} parent=1 // pred_check
      _
    $region35: #{tpu_custom_call.1} parent=1 // pred_check_branch
      %181 = sbr.rel (0) target = $region37
    $region36: #{tpu_custom_call.1} parent=1 // pred_region
      %182 = dma.done [#allocation9], 128
    $region37: #{tpu_custom_call.1} parent=1 // pred_fallthru
      _
    %183 = vsyncpa [#allocation3], 1
    %184 = vsyncpa [#allocation6], 1
    %185 = vsyncpa [#allocation4], 1
    %186 = vsyncpa [#allocation9], 1

</llo_original>
